<compile_context>
chip_gen: v5e
topology: v5e:2x2
jax: 0.10.0
libtpu: 0.0.40
codegen_flags: <defaults>
</compile_context>

<pallas_src>
import functools

import jax
import jax.numpy as jnp
import numpy as np
from jax.experimental import pallas as pl
from jax.experimental.pallas import tpu as pltpu


# ----------------------------------------------------------------------------
# Pallas kernel: forward of one batch block (Nb sequences)
# ----------------------------------------------------------------------------
def _self_attention_layer_kernel(
    x_ref,        # (Nb, L, E)   f32 input block
    mask_ref,     # (Nb, 1, L)   f32 additive key-padding mask (0 or -1e9)
    in_w_ref,     # (E, 3E)      pre-transposed in_proj weight (matmul dtype);
                  #              q columns pre-scaled by 1/sqrt(Dh)
    in_b_ref,     # (1, 3E)      f32 (q third pre-scaled by 1/sqrt(Dh))
    out_w_ref,    # (E, E)       pre-transposed out_proj weight
    out_b_ref,    # (1, E)       f32
    fc1_w_ref,    # (E, F)       pre-transposed fc1 weight
    fc1_b_ref,    # (1, F)       f32
    fc2_w_ref,    # (F, E)       pre-transposed fc2 weight
    fc2_b_ref,    # (1, E)       f32
    o_ref,        # (Nb, L, E)   f32 output block
    *,
    num_heads: int,
    matmul_dtype,
    approx_softmax: bool,
):
    Nb, L, E = x_ref.shape
    H = num_heads
    Dh = E // H
    md = matmul_dtype

    # Flatten to (Nb*L, E): leading-dim merge (layout-preserving when L is a
    # multiple of 8 -- true for the demo shapes) so every projection below is
    # one big MXU matmul over all Nb sequences in the block.
    x = x_ref[...].reshape(Nb * L, E)                              # f32
    xm = x.astype(md)

    # qkv projection.  The 1/sqrt(Dh) scale is already folded into the q
    # columns of the weight/bias on the host, so there is no in-kernel scaling
    # pass, and the whole post-bias tensor is cast to matmul dtype exactly once.
    qkv = jnp.dot(xm, in_w_ref[...], preferred_element_type=jnp.float32)
    qkv = (qkv + in_b_ref[0]).astype(md).reshape(Nb, L, 3 * E)     # (q|k|v) lanes

    mask = mask_ref[...]                                           # (Nb, 1, L) f32

    # Attention.  Heads are static lane-chunks (width Dh) of the qkv lanes --
    # no (L, H, Dh) reshape / head transpose -> no XLU relayout -- and every
    # head does one pair of matmuls batched over the Nb block sequences with a
    # single leading batch dim.  H is a small static constant (unroll does not
    # grow with block_n).
    ctx_heads = []
    for h in range(H):
        q_h = qkv[:, :, 0 * E + h * Dh:0 * E + (h + 1) * Dh]       # (Nb, L, Dh)
        k_h = qkv[:, :, 1 * E + h * Dh:1 * E + (h + 1) * Dh]
        v_h = qkv[:, :, 2 * E + h * Dh:2 * E + (h + 1) * Dh]

        s = jnp.einsum("bld,bmd->blm", q_h, k_h,
                       preferred_element_type=jnp.float32)         # (Nb, L, L) f32
        s = s + mask                                               # key-padding mask

        # numerically-stable softmax over keys (f32); divide -> EUP reciprocal
        s = s - jnp.max(s, axis=-1, keepdims=True)
        p = jnp.exp(s)
        denom = jnp.sum(p, axis=-1, keepdims=True)
        p = p * pl.reciprocal(denom, approx=approx_softmax)

        ctx_heads.append(
            jnp.einsum("blm,bmd->bld", p.astype(md), v_h,
                       preferred_element_type=jnp.float32))        # (Nb, L, Dh)

    # lane-dim concat of the Dh-wide head outputs back into E lanes
    ctx = jnp.concatenate(ctx_heads, axis=-1) if H > 1 else ctx_heads[0]
    ctx = ctx.reshape(Nb * L, E)

    attn = (jnp.dot(ctx.astype(md), out_w_ref[...],
                    preferred_element_type=jnp.float32) + out_b_ref[0])

    # residual 1 (f32)
    x1 = x + attn

    # feed-forward (fc1 -> relu -> fc2) + residual 2, matmuls in `md`.
    # NOTE: K = E only half-fills the 256-wide MXU K dim on v6e/v7x when
    # E = 128; production shapes should prefer E/F multiples of 256.
    h1 = (jnp.dot(x1.astype(md), fc1_w_ref[...],
                  preferred_element_type=jnp.float32) + fc1_b_ref[0])
    h1 = jnp.maximum(h1, 0.0)
    y = (jnp.dot(h1.astype(md), fc2_w_ref[...],
                 preferred_element_type=jnp.float32) + fc2_b_ref[0])

    o_ref[...] = (x1 + y).reshape(Nb, L, E).astype(o_ref.dtype)


# ----------------------------------------------------------------------------
# Helpers
# ----------------------------------------------------------------------------
def _vmem_capacity_bytes():
    """Physical per-core VMEM; conservative fallback = v7x (64 MiB)."""
    try:
        return int(pltpu.get_tpu_info().vmem_capacity_bytes)
    except Exception:
        return 64 << 20


def _pick_block_n(N, L, E, itemsize=4, max_block_bytes=16 << 20):
    """Pick the batch block size.

    Prefer the largest block that keeps the x/o tile within ~16 MiB (fills the
    MXU M dim and amortizes per-step overhead on v5e/v6e), but keep
    grid_n >= 2 whenever the batch allows it so the "parallel" grid axis can
    be split across the two TensorCores of a v7x chip.
    """
    divisors = [d for d in range(1, N + 1) if N % d == 0]
    if N >= 2:
        divisors = [d for d in divisors if d <= N // 2] or [1]
    fitting = [d for d in divisors if d * L * E * itemsize <= max_block_bytes]
    return max(fitting) if fitting else min(divisors)


def _vmem_limit_bytes(block_n, L, E, F, matmul_itemsize):
    """Rough VMEM budget: single-buffered weights + double-buffered IO + live acts."""
    f32 = 4
    weights = (3 * E * E + E * E + 2 * E * F) * matmul_itemsize \
        + (3 * E + E + F + E) * f32
    io_blocks = 2 * 2 * block_n * L * E * f32          # x & o, double-buffered
    mask = 2 * block_n * L * f32
    scores = 2 * block_n * L * L * f32                 # per-head scores + probs
    acts = block_n * L * (3 * E + E + 2 * E + F) * f32
    est = weights + io_blocks + mask + scores + acts
    # 2x margin, floor 32 MiB; cap below physical VMEM to leave headroom for
    # compiler-internal scratch (~56 MiB on v7x, ~112 MiB on v5e/v6e).
    cap = _vmem_capacity_bytes() * 7 // 8
    return int(min(max(2 * est, 32 << 20), cap))


def _weight_spec(shape):
    """Grid-invariant weight block: single VMEM buffer (no double-buffering).

    Only falls back to the default spec if this jax build's BlockSpec does not
    accept `pipeline_mode` -- a construction-time TypeError check, not a
    blanket exception around the pallas_call (no silent recompile).
    """
    index_map = lambda b: (0,) * len(shape)
    if hasattr(pl, "Buffered"):
        try:
            return pl.BlockSpec(shape, index_map, pipeline_mode=pl.Buffered(1))
        except TypeError:
            pass
    return pl.BlockSpec(shape, index_map)


# ----------------------------------------------------------------------------
# Wrapper: PyTorch-convention (L, N, E) in / out
# ----------------------------------------------------------------------------
def self_attention_layer(x_lne, key_padding_mask, params, num_heads, *,
                         matmul_dtype=jnp.bfloat16, approx_softmax=True,
                         block_n=None):
    L, N, E = x_lne.shape
    F = params["fc1_w"].shape[0]
    H = num_heads
    assert E % H == 0, "embed_dim must be divisible by num_heads"
    Dh = E // H

    # batch-major activations; residual / softmax math stays in f32
    x = jnp.transpose(x_lne, (1, 0, 2)).astype(jnp.float32)       # (N, L, E)

    # Additive key-padding mask.  Kept as a general (N, 1, L) f32 input so any
    # boolean mask (not only suffix padding) keeps PyTorch semantics.
    # TODO(synk): for pure length-padding masks, scalar-prefetch per-sequence
    # lengths into SMEM (PrefetchScalarGridSpec) and build the mask in-kernel
    # with a broadcasted_iota compare to drop this narrow VMEM tile.
    if key_padding_mask is None:
        mask_add = jnp.zeros((N, 1, L), jnp.float32)
    else:
        mask_add = jnp.where(key_padding_mask, -1e9, 0.0).astype(jnp.float32)
        mask_add = mask_add.reshape(N, 1, L)

    # Pre-transpose all weights once on the host so every in-kernel matmul is
    # x @ W with a lane-aligned contraction, and fold the 1/sqrt(Dh) attention
    # scale into the q rows of in_proj (zero in-kernel cost).  Matmul operands
    # are cast to `matmul_dtype` (bf16 by default); biases stay f32.
    scale = 1.0 / float(np.sqrt(Dh))
    qscale = jnp.concatenate([jnp.full((E,), scale, jnp.float32),
                              jnp.ones((2 * E,), jnp.float32)])
    in_proj_w = jnp.asarray(params["in_proj_w"]).astype(jnp.float32)   # (3E, E)
    in_proj_b = jnp.asarray(params["in_proj_b"]).astype(jnp.float32)   # (3E,)
    in_w = (in_proj_w * qscale[:, None]).T.astype(matmul_dtype)        # (E, 3E)
    in_b = (in_proj_b * qscale).reshape(1, 3 * E)
    out_w = jnp.asarray(params["out_proj_w"]).T.astype(matmul_dtype)   # (E, E)
    out_b = jnp.asarray(params["out_proj_b"]).reshape(1, E).astype(jnp.float32)
    fc1_w = jnp.asarray(params["fc1_w"]).T.astype(matmul_dtype)        # (E, F)
    fc1_b = jnp.asarray(params["fc1_b"]).reshape(1, F).astype(jnp.float32)
    fc2_w = jnp.asarray(params["fc2_w"]).T.astype(matmul_dtype)        # (F, E)
    fc2_b = jnp.asarray(params["fc2_b"]).reshape(1, E).astype(jnp.float32)

    if block_n is None:
        block_n = _pick_block_n(N, L, E)
    assert N % block_n == 0, "block_n must divide the batch size"
    grid_n = N // block_n

    kernel = functools.partial(
        _self_attention_layer_kernel,
        num_heads=H, matmul_dtype=matmul_dtype, approx_softmax=approx_softmax)

    vmem_limit = _vmem_limit_bytes(block_n, L, E, F,
                                   jnp.dtype(matmul_dtype).itemsize)

    out = pl.pallas_call(
        kernel,
        out_shape=jax.ShapeDtypeStruct((N, L, E), jnp.float32),
        grid=(grid_n,),
        in_specs=[
            pl.BlockSpec((block_n, L, E), lambda b: (b, 0, 0)),
            pl.BlockSpec((block_n, 1, L), lambda b: (b, 0, 0)),
            _weight_spec((E, 3 * E)), _weight_spec((1, 3 * E)),
            _weight_spec((E, E)), _weight_spec((1, E)),
            _weight_spec((E, F)), _weight_spec((1, F)),
            _weight_spec((F, E)), _weight_spec((1, E)),
        ],
        out_specs=pl.BlockSpec((block_n, L, E), lambda b: (b, 0, 0)),
        compiler_params=pltpu.CompilerParams(
            dimension_semantics=("parallel",),   # megacore splits batch blocks
            vmem_limit_bytes=vmem_limit),
    )(x, mask_add, in_w, in_b, out_w, out_b, fc1_w, fc1_b, fc2_w, fc2_b)

    return jnp.transpose(out, (1, 0, 2))                     # back to (L, N, E)


# ----------------------------------------------------------------------------
# Pure-JAX reference (mirrors torch.nn.MultiheadAttention, eval mode)
# ----------------------------------------------------------------------------
def reference_forward(x, key_padding_mask, p, num_heads):
    L, N, E = x.shape
    H = num_heads
    Dh = E // H
    qkv = jnp.einsum("lne,fe->lnf", x, p["in_proj_w"]) + p["in_proj_b"]
    q, k, v = jnp.split(qkv, 3, axis=-1)
    q = q.reshape(L, N, H, Dh)
    k = k.reshape(L, N, H, Dh)
    v = v.reshape(L, N, H, Dh)
    scores = jnp.einsum("lnhd,mnhd->nhlm", q, k) / jnp.sqrt(jnp.float32(Dh))
    if key_padding_mask is not None:
        scores = scores + jnp.where(key_padding_mask, -1e9, 0.0)[:, None, None, :]
    w = jax.nn.softmax(scores, axis=-1)
    ctx = jnp.einsum("nhlm,mnhd->lnhd", w, v).reshape(L, N, E)
    attn = ctx @ p["out_proj_w"].T + p["out_proj_b"]
    x1 = x + attn
    h = jax.nn.relu(x1 @ p["fc1_w"].T + p["fc1_b"])
    y = h @ p["fc2_w"].T + p["fc2_b"]
    return x1 + y


# ----------------------------------------------------------------------------
# Main
# ----------------------------------------------------------------------------
if __name__ == "__main__":
    def make_params(key, E, F):
        ks = jax.random.split(key, 8)
        return {
            "in_proj_w":  jax.random.normal(ks[0], (3 * E, E), jnp.float32) * 0.1,
            "in_proj_b":  jax.random.normal(ks[1], (3 * E,), jnp.float32) * 0.01,
            "out_proj_w": jax.random.normal(ks[2], (E, E), jnp.float32) * 0.1,
            "out_proj_b": jax.random.normal(ks[3], (E,), jnp.float32) * 0.01,
            "fc1_w":      jax.random.normal(ks[4], (F, E), jnp.float32) * 0.1,
            "fc1_b":      jax.random.normal(ks[5], (F,), jnp.float32) * 0.01,
            "fc2_w":      jax.random.normal(ks[6], (E, F), jnp.float32) * 0.1,
            "fc2_b":      jax.random.normal(ks[7], (E,), jnp.float32) * 0.01,
        }

    root = jax.random.PRNGKey(0)
    k1, k2, k3, k4 = jax.random.split(root, 4)

    # --- Test 1: small shapes, exact math (f32 MXU, exact reciprocal) --------
    L, N, E, H, F = 8, 2, 32, 4, 64
    params = make_params(k1, E, F)
    x = jax.random.normal(k2, (L, N, E), jnp.float32)
    kpm = jnp.zeros((N, L), dtype=bool).at[1, L - 2:].set(True)

    out = self_attention_layer(x, kpm, params, H,
                               matmul_dtype=jnp.float32, approx_softmax=False)
    out = jax.block_until_ready(out)
    ref = reference_forward(x, kpm, params, H)
    np.testing.assert_allclose(np.asarray(out), np.asarray(ref),
                               rtol=1e-4, atol=1e-4)

    # --- Test 2: lane-dense E=128, multi-step batched grid, bf16 operands ----
    L2, N2, E2, H2, F2 = 16, 8, 128, 4, 256
    params2 = make_params(k3, E2, F2)
    x2 = jax.random.normal(k4, (L2, N2, E2), jnp.float32)
    kpm2 = jnp.zeros((N2, L2), dtype=bool)
    kpm2 = kpm2.at[0, L2 - 3:].set(True).at[5, L2 - 6:].set(True)

    out2 = self_attention_layer(x2, kpm2, params2, H2)   # bf16 + approx recip
    out2 = jax.block_until_ready(out2)
    ref2 = reference_forward(x2, kpm2, params2, H2)
    np.testing.assert_allclose(np.asarray(out2), np.asarray(ref2),
                               rtol=5e-2, atol=5e-2)

    print("KERNEL_OK")
</pallas_src>

<mosaic_0001>
module attributes {stable_mosaic.version = 11 : i64} {
  func.func @_self_attention_layer_kernel(%arg0: i32, %arg1: memref<1x8x32xf32, #tpu.memory_space<vmem>>, %arg2: memref<1x1x8xf32, #tpu.memory_space<vmem>>, %arg3: memref<32x96xf32, #tpu.memory_space<vmem>>, %arg4: memref<1x96xf32, #tpu.memory_space<vmem>>, %arg5: memref<32x32xf32, #tpu.memory_space<vmem>>, %arg6: memref<1x32xf32, #tpu.memory_space<vmem>>, %arg7: memref<32x64xf32, #tpu.memory_space<vmem>>, %arg8: memref<1x64xf32, #tpu.memory_space<vmem>>, %arg9: memref<64x32xf32, #tpu.memory_space<vmem>>, %arg10: memref<1x32xf32, #tpu.memory_space<vmem>>, %arg11: memref<1x8x32xf32, #tpu.memory_space<vmem>>) attributes {dimension_semantics = [#tpu.dimension_semantics<parallel>], iteration_bounds = array<i64: 2>, scalar_prefetch = 0 : i64, scratch_operands = 0 : i64, tpu.core_type = #tpu.core_type<tc>, window_params = [{transform_indices = @transform_0, window_bounds = array<i64: 1, 8, 32>}, {transform_indices = @transform_1, window_bounds = array<i64: 1, 1, 8>}, {pipeline_mode = #tpu.pipeline_mode<synchronous>, transform_indices = @transform_2, window_bounds = array<i64: 32, 96>}, {pipeline_mode = #tpu.pipeline_mode<synchronous>, transform_indices = @transform_3, window_bounds = array<i64: 1, 96>}, {pipeline_mode = #tpu.pipeline_mode<synchronous>, transform_indices = @transform_4, window_bounds = array<i64: 32, 32>}, {pipeline_mode = #tpu.pipeline_mode<synchronous>, transform_indices = @transform_5, window_bounds = array<i64: 1, 32>}, {pipeline_mode = #tpu.pipeline_mode<synchronous>, transform_indices = @transform_6, window_bounds = array<i64: 32, 64>}, {pipeline_mode = #tpu.pipeline_mode<synchronous>, transform_indices = @transform_7, window_bounds = array<i64: 1, 64>}, {pipeline_mode = #tpu.pipeline_mode<synchronous>, transform_indices = @transform_8, window_bounds = array<i64: 64, 32>}, {pipeline_mode = #tpu.pipeline_mode<synchronous>, transform_indices = @transform_9, window_bounds = array<i64: 1, 32>}, {transform_indices = @transform_10, window_bounds = array<i64: 1, 8, 32>}]} {
    %c0 = arith.constant 0 : index
    %c0_0 = arith.constant 0 : index
    %c0_1 = arith.constant 0 : index
    %0 = vector.load %arg1[%c0, %c0_0, %c0_1] : memref<1x8x32xf32, #tpu.memory_space<vmem>>, vector<1x8x32xf32>
    %1 = vector.shape_cast %0 : vector<1x8x32xf32> to vector<8x32xf32>
    %c0_2 = arith.constant 0 : index
    %c0_3 = arith.constant 0 : index
    %2 = vector.load %arg3[%c0_2, %c0_3] : memref<32x96xf32, #tpu.memory_space<vmem>>, vector<32x96xf32>
    %cst = arith.constant dense<0.000000e+00> : vector<8x96xf32>
    %3 = tpu.matmul %1, %2, %cst {dimension_numbers = #tpu.dot_dimension_numbers<[1], [0], [0], [1], [0, 0, 1, 1], [], []>} : vector<8x32xf32>, vector<32x96xf32>, vector<8x96xf32> -> vector<8x96xf32>
    %c0_4 = arith.constant 0 : index
    %c0_5 = arith.constant 0 : index
    %4 = vector.load %arg4[%c0_4, %c0_5] : memref<1x96xf32, #tpu.memory_space<vmem>>, vector<1x96xf32>
    %5 = vector.shape_cast %4 : vector<1x96xf32> to vector<96xf32>
    %6 = vector.shape_cast %5 : vector<96xf32> to vector<1x96xf32>
    %7 = vector.broadcast %6 : vector<1x96xf32> to vector<8x96xf32>
    %8 = arith.addf %3, %7 : vector<8x96xf32>
    %9 = vector.shape_cast %8 : vector<8x96xf32> to vector<1x8x96xf32>
    %c0_6 = arith.constant 0 : index
    %c0_7 = arith.constant 0 : index
    %c0_8 = arith.constant 0 : index
    %10 = vector.load %arg2[%c0_6, %c0_7, %c0_8] : memref<1x1x8xf32, #tpu.memory_space<vmem>>, vector<1x1x8xf32>
    %11 = vector.extract_strided_slice %9 {offsets = [0, 0, 0], sizes = [1, 8, 8], strides = [1, 1, 1]} : vector<1x8x96xf32> to vector<1x8x8xf32>
    %12 = vector.extract_strided_slice %9 {offsets = [0, 0, 32], sizes = [1, 8, 8], strides = [1, 1, 1]} : vector<1x8x96xf32> to vector<1x8x8xf32>
    %13 = vector.extract_strided_slice %9 {offsets = [0, 0, 64], sizes = [1, 8, 8], strides = [1, 1, 1]} : vector<1x8x96xf32> to vector<1x8x8xf32>
    "tpu.trace_start"() <{level = 10 : i32, message = "bld,bmd->blm"}> : () -> ()
    %cst_9 = arith.constant dense<0.000000e+00> : vector<1x8x8xf32>
    %14 = tpu.matmul %11, %12, %cst_9 {dimension_numbers = #tpu.dot_dimension_numbers<[2], [2], [1], [1], [0, 0, 0, 1, 1, 1], [0], [0]>} : vector<1x8x8xf32>, vector<1x8x8xf32>, vector<1x8x8xf32> -> vector<1x8x8xf32>
    "tpu.trace_stop"() : () -> ()
    %15 = vector.broadcast %10 : vector<1x1x8xf32> to vector<1x8x8xf32>
    %16 = arith.addf %14, %15 : vector<1x8x8xf32>
    %cst_10 = arith.constant dense<0xFF800000> : vector<1x8xf32>
    %17 = vector.multi_reduction <maximumf>, %16, %cst_10 [2] : vector<1x8x8xf32> to vector<1x8xf32>
    %18 = vector.shape_cast %17 : vector<1x8xf32> to vector<1x8x1xf32>
    %19 = vector.broadcast %18 : vector<1x8x1xf32> to vector<1x8x8xf32>
    %20 = arith.subf %16, %19 : vector<1x8x8xf32>
    %21 = math.exp %20 : vector<1x8x8xf32>
    %cst_11 = arith.constant dense<0.000000e+00> : vector<1x8xf32>
    %22 = vector.multi_reduction <add>, %21, %cst_11 [2] : vector<1x8x8xf32> to vector<1x8xf32>
    %23 = vector.shape_cast %22 : vector<1x8xf32> to vector<1x8x1xf32>
    %24 = tpu.reciprocal %23 : vector<1x8x1xf32> -> vector<1x8x1xf32>
    %25 = vector.broadcast %24 : vector<1x8x1xf32> to vector<1x8x8xf32>
    %26 = arith.mulf %21, %25 : vector<1x8x8xf32>
    "tpu.trace_start"() <{level = 10 : i32, message = "blm,bmd->bld"}> : () -> ()
    %cst_12 = arith.constant dense<0.000000e+00> : vector<1x8x8xf32>
    %27 = tpu.matmul %26, %13, %cst_12 {dimension_numbers = #tpu.dot_dimension_numbers<[2], [1], [1], [2], [0, 0, 0, 1, 1, 2], [0], [0]>} : vector<1x8x8xf32>, vector<1x8x8xf32>, vector<1x8x8xf32> -> vector<1x8x8xf32>
    "tpu.trace_stop"() : () -> ()
    %28 = vector.extract_strided_slice %9 {offsets = [0, 0, 8], sizes = [1, 8, 8], strides = [1, 1, 1]} : vector<1x8x96xf32> to vector<1x8x8xf32>
    %29 = vector.extract_strided_slice %9 {offsets = [0, 0, 40], sizes = [1, 8, 8], strides = [1, 1, 1]} : vector<1x8x96xf32> to vector<1x8x8xf32>
    %30 = vector.extract_strided_slice %9 {offsets = [0, 0, 72], sizes = [1, 8, 8], strides = [1, 1, 1]} : vector<1x8x96xf32> to vector<1x8x8xf32>
    "tpu.trace_start"() <{level = 10 : i32, message = "bld,bmd->blm"}> : () -> ()
    %cst_13 = arith.constant dense<0.000000e+00> : vector<1x8x8xf32>
    %31 = tpu.matmul %28, %29, %cst_13 {dimension_numbers = #tpu.dot_dimension_numbers<[2], [2], [1], [1], [0, 0, 0, 1, 1, 1], [0], [0]>} : vector<1x8x8xf32>, vector<1x8x8xf32>, vector<1x8x8xf32> -> vector<1x8x8xf32>
    "tpu.trace_stop"() : () -> ()
    %32 = vector.broadcast %10 : vector<1x1x8xf32> to vector<1x8x8xf32>
    %33 = arith.addf %31, %32 : vector<1x8x8xf32>
    %cst_14 = arith.constant dense<0xFF800000> : vector<1x8xf32>
    %34 = vector.multi_reduction <maximumf>, %33, %cst_14 [2] : vector<1x8x8xf32> to vector<1x8xf32>
    %35 = vector.shape_cast %34 : vector<1x8xf32> to vector<1x8x1xf32>
    %36 = vector.broadcast %35 : vector<1x8x1xf32> to vector<1x8x8xf32>
    %37 = arith.subf %33, %36 : vector<1x8x8xf32>
    %38 = math.exp %37 : vector<1x8x8xf32>
    %cst_15 = arith.constant dense<0.000000e+00> : vector<1x8xf32>
    %39 = vector.multi_reduction <add>, %38, %cst_15 [2] : vector<1x8x8xf32> to vector<1x8xf32>
    %40 = vector.shape_cast %39 : vector<1x8xf32> to vector<1x8x1xf32>
    %41 = tpu.reciprocal %40 : vector<1x8x1xf32> -> vector<1x8x1xf32>
    %42 = vector.broadcast %41 : vector<1x8x1xf32> to vector<1x8x8xf32>
    %43 = arith.mulf %38, %42 : vector<1x8x8xf32>
    "tpu.trace_start"() <{level = 10 : i32, message = "blm,bmd->bld"}> : () -> ()
    %cst_16 = arith.constant dense<0.000000e+00> : vector<1x8x8xf32>
    %44 = tpu.matmul %43, %30, %cst_16 {dimension_numbers = #tpu.dot_dimension_numbers<[2], [1], [1], [2], [0, 0, 0, 1, 1, 2], [0], [0]>} : vector<1x8x8xf32>, vector<1x8x8xf32>, vector<1x8x8xf32> -> vector<1x8x8xf32>
    "tpu.trace_stop"() : () -> ()
    %45 = vector.extract_strided_slice %9 {offsets = [0, 0, 16], sizes = [1, 8, 8], strides = [1, 1, 1]} : vector<1x8x96xf32> to vector<1x8x8xf32>
    %46 = vector.extract_strided_slice %9 {offsets = [0, 0, 48], sizes = [1, 8, 8], strides = [1, 1, 1]} : vector<1x8x96xf32> to vector<1x8x8xf32>
    %47 = vector.extract_strided_slice %9 {offsets = [0, 0, 80], sizes = [1, 8, 8], strides = [1, 1, 1]} : vector<1x8x96xf32> to vector<1x8x8xf32>
    "tpu.trace_start"() <{level = 10 : i32, message = "bld,bmd->blm"}> : () -> ()
    %cst_17 = arith.constant dense<0.000000e+00> : vector<1x8x8xf32>
    %48 = tpu.matmul %45, %46, %cst_17 {dimension_numbers = #tpu.dot_dimension_numbers<[2], [2], [1], [1], [0, 0, 0, 1, 1, 1], [0], [0]>} : vector<1x8x8xf32>, vector<1x8x8xf32>, vector<1x8x8xf32> -> vector<1x8x8xf32>
    "tpu.trace_stop"() : () -> ()
    %49 = vector.broadcast %10 : vector<1x1x8xf32> to vector<1x8x8xf32>
    %50 = arith.addf %48, %49 : vector<1x8x8xf32>
    %cst_18 = arith.constant dense<0xFF800000> : vector<1x8xf32>
    %51 = vector.multi_reduction <maximumf>, %50, %cst_18 [2] : vector<1x8x8xf32> to vector<1x8xf32>
    %52 = vector.shape_cast %51 : vector<1x8xf32> to vector<1x8x1xf32>
    %53 = vector.broadcast %52 : vector<1x8x1xf32> to vector<1x8x8xf32>
    %54 = arith.subf %50, %53 : vector<1x8x8xf32>
    %55 = math.exp %54 : vector<1x8x8xf32>
    %cst_19 = arith.constant dense<0.000000e+00> : vector<1x8xf32>
    %56 = vector.multi_reduction <add>, %55, %cst_19 [2] : vector<1x8x8xf32> to vector<1x8xf32>
    %57 = vector.shape_cast %56 : vector<1x8xf32> to vector<1x8x1xf32>
    %58 = tpu.reciprocal %57 : vector<1x8x1xf32> -> vector<1x8x1xf32>
    %59 = vector.broadcast %58 : vector<1x8x1xf32> to vector<1x8x8xf32>
    %60 = arith.mulf %55, %59 : vector<1x8x8xf32>
    "tpu.trace_start"() <{level = 10 : i32, message = "blm,bmd->bld"}> : () -> ()
    %cst_20 = arith.constant dense<0.000000e+00> : vector<1x8x8xf32>
    %61 = tpu.matmul %60, %47, %cst_20 {dimension_numbers = #tpu.dot_dimension_numbers<[2], [1], [1], [2], [0, 0, 0, 1, 1, 2], [0], [0]>} : vector<1x8x8xf32>, vector<1x8x8xf32>, vector<1x8x8xf32> -> vector<1x8x8xf32>
    "tpu.trace_stop"() : () -> ()
    %62 = vector.extract_strided_slice %9 {offsets = [0, 0, 24], sizes = [1, 8, 8], strides = [1, 1, 1]} : vector<1x8x96xf32> to vector<1x8x8xf32>
    %63 = vector.extract_strided_slice %9 {offsets = [0, 0, 56], sizes = [1, 8, 8], strides = [1, 1, 1]} : vector<1x8x96xf32> to vector<1x8x8xf32>
    %64 = vector.extract_strided_slice %9 {offsets = [0, 0, 88], sizes = [1, 8, 8], strides = [1, 1, 1]} : vector<1x8x96xf32> to vector<1x8x8xf32>
    "tpu.trace_start"() <{level = 10 : i32, message = "bld,bmd->blm"}> : () -> ()
    %cst_21 = arith.constant dense<0.000000e+00> : vector<1x8x8xf32>
    %65 = tpu.matmul %62, %63, %cst_21 {dimension_numbers = #tpu.dot_dimension_numbers<[2], [2], [1], [1], [0, 0, 0, 1, 1, 1], [0], [0]>} : vector<1x8x8xf32>, vector<1x8x8xf32>, vector<1x8x8xf32> -> vector<1x8x8xf32>
    "tpu.trace_stop"() : () -> ()
    %66 = vector.broadcast %10 : vector<1x1x8xf32> to vector<1x8x8xf32>
    %67 = arith.addf %65, %66 : vector<1x8x8xf32>
    %cst_22 = arith.constant dense<0xFF800000> : vector<1x8xf32>
    %68 = vector.multi_reduction <maximumf>, %67, %cst_22 [2] : vector<1x8x8xf32> to vector<1x8xf32>
    %69 = vector.shape_cast %68 : vector<1x8xf32> to vector<1x8x1xf32>
    %70 = vector.broadcast %69 : vector<1x8x1xf32> to vector<1x8x8xf32>
    %71 = arith.subf %67, %70 : vector<1x8x8xf32>
    %72 = math.exp %71 : vector<1x8x8xf32>
    %cst_23 = arith.constant dense<0.000000e+00> : vector<1x8xf32>
    %73 = vector.multi_reduction <add>, %72, %cst_23 [2] : vector<1x8x8xf32> to vector<1x8xf32>
    %74 = vector.shape_cast %73 : vector<1x8xf32> to vector<1x8x1xf32>
    %75 = tpu.reciprocal %74 : vector<1x8x1xf32> -> vector<1x8x1xf32>
    %76 = vector.broadcast %75 : vector<1x8x1xf32> to vector<1x8x8xf32>
    %77 = arith.mulf %72, %76 : vector<1x8x8xf32>
    "tpu.trace_start"() <{level = 10 : i32, message = "blm,bmd->bld"}> : () -> ()
    %cst_24 = arith.constant dense<0.000000e+00> : vector<1x8x8xf32>
    %78 = tpu.matmul %77, %64, %cst_24 {dimension_numbers = #tpu.dot_dimension_numbers<[2], [1], [1], [2], [0, 0, 0, 1, 1, 2], [0], [0]>} : vector<1x8x8xf32>, vector<1x8x8xf32>, vector<1x8x8xf32> -> vector<1x8x8xf32>
    "tpu.trace_stop"() : () -> ()
    %79 = tpu.concatenate %27, %44, %61, %78 in 2 : vector<1x8x8xf32>, vector<1x8x8xf32>, vector<1x8x8xf32>, vector<1x8x8xf32> -> vector<1x8x32xf32>
    %80 = vector.shape_cast %79 : vector<1x8x32xf32> to vector<8x32xf32>
    %c0_25 = arith.constant 0 : index
    %c0_26 = arith.constant 0 : index
    %81 = vector.load %arg5[%c0_25, %c0_26] : memref<32x32xf32, #tpu.memory_space<vmem>>, vector<32x32xf32>
    %cst_27 = arith.constant dense<0.000000e+00> : vector<8x32xf32>
    %82 = tpu.matmul %80, %81, %cst_27 {dimension_numbers = #tpu.dot_dimension_numbers<[1], [0], [0], [1], [0, 0, 1, 1], [], []>} : vector<8x32xf32>, vector<32x32xf32>, vector<8x32xf32> -> vector<8x32xf32>
    %c0_28 = arith.constant 0 : index
    %c0_29 = arith.constant 0 : index
    %83 = vector.load %arg6[%c0_28, %c0_29] : memref<1x32xf32, #tpu.memory_space<vmem>>, vector<1x32xf32>
    %84 = vector.shape_cast %83 : vector<1x32xf32> to vector<32xf32>
    %85 = vector.shape_cast %84 : vector<32xf32> to vector<1x32xf32>
    %86 = vector.broadcast %85 : vector<1x32xf32> to vector<8x32xf32>
    %87 = arith.addf %82, %86 : vector<8x32xf32>
    %88 = arith.addf %1, %87 : vector<8x32xf32>
    %c0_30 = arith.constant 0 : index
    %c0_31 = arith.constant 0 : index
    %89 = vector.load %arg7[%c0_30, %c0_31] : memref<32x64xf32, #tpu.memory_space<vmem>>, vector<32x64xf32>
    %cst_32 = arith.constant dense<0.000000e+00> : vector<8x64xf32>
    %90 = tpu.matmul %88, %89, %cst_32 {dimension_numbers = #tpu.dot_dimension_numbers<[1], [0], [0], [1], [0, 0, 1, 1], [], []>} : vector<8x32xf32>, vector<32x64xf32>, vector<8x64xf32> -> vector<8x64xf32>
    %c0_33 = arith.constant 0 : index
    %c0_34 = arith.constant 0 : index
    %91 = vector.load %arg8[%c0_33, %c0_34] : memref<1x64xf32, #tpu.memory_space<vmem>>, vector<1x64xf32>
    %92 = vector.shape_cast %91 : vector<1x64xf32> to vector<64xf32>
    %93 = vector.shape_cast %92 : vector<64xf32> to vector<1x64xf32>
    %94 = vector.broadcast %93 : vector<1x64xf32> to vector<8x64xf32>
    %95 = arith.addf %90, %94 : vector<8x64xf32>
    %cst_35 = arith.constant 0.000000e+00 : f32
    %96 = vector.broadcast %cst_35 : f32 to vector<8x64xf32>
    %97 = arith.maximumf %95, %96 : vector<8x64xf32>
    %c0_36 = arith.constant 0 : index
    %c0_37 = arith.constant 0 : index
    %98 = vector.load %arg9[%c0_36, %c0_37] : memref<64x32xf32, #tpu.memory_space<vmem>>, vector<64x32xf32>
    %cst_38 = arith.constant dense<0.000000e+00> : vector<8x32xf32>
    %99 = tpu.matmul %97, %98, %cst_38 {dimension_numbers = #tpu.dot_dimension_numbers<[1], [0], [0], [1], [0, 0, 1, 1], [], []>} : vector<8x64xf32>, vector<64x32xf32>, vector<8x32xf32> -> vector<8x32xf32>
    %c0_39 = arith.constant 0 : index
    %c0_40 = arith.constant 0 : index
    %100 = vector.load %arg10[%c0_39, %c0_40] : memref<1x32xf32, #tpu.memory_space<vmem>>, vector<1x32xf32>
    %101 = vector.shape_cast %100 : vector<1x32xf32> to vector<32xf32>
    %102 = vector.shape_cast %101 : vector<32xf32> to vector<1x32xf32>
    %103 = vector.broadcast %102 : vector<1x32xf32> to vector<8x32xf32>
    %104 = arith.addf %99, %103 : vector<8x32xf32>
    %105 = arith.addf %88, %104 : vector<8x32xf32>
    %106 = vector.shape_cast %105 : vector<8x32xf32> to vector<1x8x32xf32>
    %c0_41 = arith.constant 0 : index
    %c0_42 = arith.constant 0 : index
    %c0_43 = arith.constant 0 : index
    %107 = vector.load %arg11[%c0_41, %c0_42, %c0_43] : memref<1x8x32xf32, #tpu.memory_space<vmem>>, vector<1x8x32xf32>
    tpu.vector_store %arg11[%c0_41, %c0_42, %c0_43], %106 {strides = array<i32>} : memref<1x8x32xf32, #tpu.memory_space<vmem>>, vector<1x8x32xf32>,
    return
  }
  func.func @transform_0(%arg0: i32) -> (i32, i32, i32) {
    %c0_i32 = arith.constant 0 : i32
    %c0_i32_0 = arith.constant 0 : i32
    %c0_i32_1 = arith.constant 0 : i32
    return %arg0, %c0_i32, %c0_i32_0 : i32, i32, i32
  }
  func.func @transform_1(%arg0: i32) -> (i32, i32, i32) {
    %c0_i32 = arith.constant 0 : i32
    %c0_i32_0 = arith.constant 0 : i32
    %c0_i32_1 = arith.constant 0 : i32
    return %arg0, %c0_i32, %c0_i32_0 : i32, i32, i32
  }
  func.func @transform_2(%arg0: i32) -> (i32, i32) {
    %c0_i32 = arith.constant 0 : i32
    %c0_i32_0 = arith.constant 0 : i32
    %c0_i32_1 = arith.constant 0 : i32
    return %c0_i32, %c0_i32_0 : i32, i32
  }
  func.func @transform_3(%arg0: i32) -> (i32, i32) {
    %c0_i32 = arith.constant 0 : i32
    %c0_i32_0 = arith.constant 0 : i32
    %c0_i32_1 = arith.constant 0 : i32
    return %c0_i32, %c0_i32_0 : i32, i32
  }
  func.func @transform_4(%arg0: i32) -> (i32, i32) {
    %c0_i32 = arith.constant 0 : i32
    %c0_i32_0 = arith.constant 0 : i32
    %c0_i32_1 = arith.constant 0 : i32
    return %c0_i32, %c0_i32_0 : i32, i32
  }
  func.func @transform_5(%arg0: i32) -> (i32, i32) {
    %c0_i32 = arith.constant 0 : i32
    %c0_i32_0 = arith.constant 0 : i32
    %c0_i32_1 = arith.constant 0 : i32
    return %c0_i32, %c0_i32_0 : i32, i32
  }
  func.func @transform_6(%arg0: i32) -> (i32, i32) {
    %c0_i32 = arith.constant 0 : i32
    %c0_i32_0 = arith.constant 0 : i32
    %c0_i32_1 = arith.constant 0 : i32
    return %c0_i32, %c0_i32_0 : i32, i32
  }
  func.func @transform_7(%arg0: i32) -> (i32, i32) {
    %c0_i32 = arith.constant 0 : i32
    %c0_i32_0 = arith.constant 0 : i32
    %c0_i32_1 = arith.constant 0 : i32
    return %c0_i32, %c0_i32_0 : i32, i32
  }
  func.func @transform_8(%arg0: i32) -> (i32, i32) {
    %c0_i32 = arith.constant 0 : i32
    %c0_i32_0 = arith.constant 0 : i32
    %c0_i32_1 = arith.constant 0 : i32
    return %c0_i32, %c0_i32_0 : i32, i32
  }
  func.func @transform_9(%arg0: i32) -> (i32, i32) {
    %c0_i32 = arith.constant 0 : i32
    %c0_i32_0 = arith.constant 0 : i32
    %c0_i32_1 = arith.constant 0 : i32
    return %c0_i32, %c0_i32_0 : i32, i32
  }
  func.func @transform_10(%arg0: i32) -> (i32, i32, i32) {
    %c0_i32 = arith.constant 0 : i32
    %c0_i32_0 = arith.constant 0 : i32
    %c0_i32_1 = arith.constant 0 : i32
    return %arg0, %c0_i32, %c0_i32_0 : i32, i32, i32
  }
}

</mosaic_0001>

<llo_original>
// kernel: tpu_custom_call.1
$region0: #{tpu_custom_call.1}
  #allocation0 [shape = 'u32[]', space=smem, size = 0x4, offset = 0x4, fixed_abs, tag = 'smem constant byte address 0x4 - core index']
  #allocation1 [shape = 'u32[72,128]{1,0:T(1,128)}', space=vmem, size = 0x9000, scoped, tag = 'internal scratch']
  %s0 = inlined_call_operand.hbm [shape: f32[2,8,32], index: 0, kind: input, shape index: {}]
  %s1 = inlined_call_operand.hbm [shape: f32[2,1,8], index: 1, kind: input, shape index: {}]
  %s2 = inlined_call_operand.vmem [shape: f32[32,96], index: 2, kind: input, shape index: {}]
  %s3 = inlined_call_operand.vmem [shape: f32[1,96], index: 3, kind: input, shape index: {}]
  %s4 = inlined_call_operand.vmem [shape: f32[32,32], index: 4, kind: input, shape index: {}]
  %s5 = inlined_call_operand.vmem [shape: f32[1,32], index: 5, kind: input, shape index: {}]
  %s6 = inlined_call_operand.vmem [shape: f32[32,64], index: 6, kind: input, shape index: {}]
  %s7 = inlined_call_operand.vmem [shape: f32[1,64], index: 7, kind: input, shape index: {}]
  %s8 = inlined_call_operand.vmem [shape: f32[64,32], index: 8, kind: input, shape index: {}]
  %s9 = inlined_call_operand.vmem [shape: f32[1,32], index: 9, kind: input, shape index: {}]
  %s10 = inlined_call_operand.hbm [shape: f32[2,8,32], index: 10, kind: output, shape index: {}]
  %s11 = sld [smem:[#allocation0]]
  $region81: #{tpu_custom_call.1} parent=0
    _
  %s13 = ssub.s32 1, %s11
  %s14 = scalar_select 0, %s13, %s11
  $region1: #{tpu_custom_call.1} parent=0
    #allocation2 [shape = 'u8[8192]{0}', space=vmem, size = 0x2000, scoped, tag = 'input window, operand 0']
    #allocation3 [shape = 's32[2]{0}', space=sflag, size = 0x8, scoped, tag = 'scoped memory for tpu_custom_call.1']
    #allocation4 [shape = 's32[2]{0}', space=sflag, size = 0x8, scoped, tag = 'scoped memory for tpu_custom_call.1']
    #allocation5 [shape = 'u8[1024]{0}', space=vmem, size = 0x400, scoped, tag = 'input window, operand 1']
    #allocation6 [shape = 's32[2]{0}', space=sflag, size = 0x8, scoped, tag = 'scoped memory for tpu_custom_call.1']
    #allocation7 [shape = 'u8[8192]{0}', space=vmem, size = 0x2000, scoped, tag = 'output window, operand 0']
    %15 = vsyncpa [#allocation3], 0
    %s16 = scalar_lea.sflag [#allocation3], 1
    %17 = vsyncpa %s16, 0
    %18 = vsyncpa [#allocation6], 0
    %s19 = scalar_lea.sflag [#allocation6], 1
    %20 = vsyncpa %s19, 0
    %21 = vsyncpa [#allocation4], 0
    %s22 = scalar_lea.sflag [#allocation4], 1
    %23 = vsyncpa %s22, 0
    loop: start=0, step=1, limit=4
    $region2: #{tpu_custom_call.1} parent=1 // loop_pre_header
      _
    $region3: #{tpu_custom_call.1} parent=1 // loop_header
      %s25 = sphi 0, %s29
      %p26 = scmp.ge.s32.totalorder %s25, 4
      %s35 = sphi 0, %s37
      %s38 = sphi 0, %s35
      %s39 = sphi 0, %s38
      %s55 = sphi 0, %s39
      %s61 = sphi 0, %s63
      %s64 = sphi 0, %s61
      %s65 = sphi 0, %s64
      %s81 = sphi 0, %s65
      %s85 = sphi 0, %s85
      %s87 = sphi 0, %s85
      %s88 = sphi 0, %s87
      %s102 = sphi 0, %s88
      %s106 = sphi 0, %s106
      %s108 = sphi 0, %s106
      %s109 = sphi 0, %s108
      %s123 = sphi 0, %s109
      %s127 = sphi 0, %s127
      %s129 = sphi 0, %s127
      %s130 = sphi 0, %s129
      %s144 = sphi 0, %s130
      %s148 = sphi 0, %s148
      %s150 = sphi 0, %s148
      %s151 = sphi 0, %s150
      %s165 = sphi 0, %s151
      %s169 = sphi 0, %s169
      %s171 = sphi 0, %s169
      %s172 = sphi 0, %s171
      %s186 = sphi 0, %s172
      %s190 = sphi 0, %s190
      %s192 = sphi 0, %s190
      %s193 = sphi 0, %s192
      %s207 = sphi 0, %s193
      %s211 = sphi 0, %s211
      %s213 = sphi 0, %s211
      %s214 = sphi 0, %s213
      %s228 = sphi 0, %s214
      %s232 = sphi 0, %s232
      %s234 = sphi 0, %s232
      %s235 = sphi 0, %s234
      %s249 = sphi 0, %s235
      %s255 = sphi 0, %s257
      %s258 = sphi 0, %s255
      %s259 = sphi 0, %s258
      %s275 = sphi 0, %s259
    $region4: #{tpu_custom_call.1} parent=1 // loop_header_branch
      %28 = sbr.rel (%p26) target = $region8
    $region5: #{tpu_custom_call.1} parent=1 // loop_body
      %s30 = ssub.s32 %s25, 1
      %s31 = ssub.s32 %s25, 2
      %s32 = sadd.s32 %s25, 1
      %s33 = ssub.s32 %s25, %s32
      %p34 = scmp.eq.s32.totalorder %s33, 0
      %s36 = sadd.s32 %s35, 1
      %s37 = scalar_select %p34, %s35, %s36
      %p40 = pneg %p34
      %p41 = scmp.eq.s32.totalorder %s25, 1
      %p42 = por %p40, %p41
      %p43 = scmp.ne.s32.totalorder %s35, %s38
      %p44 = scmp.eq.s32.totalorder %s25, 0
      %p45 = por %p43, %p44
      %p46 = scmp.ne.s32.totalorder %s35, %s38
      %p47 = scmp.eq.s32.totalorder %s30, 1
      %p48 = por %p46, %p47
      %p49 = scmp.ne.s32.totalorder %s38, %s39
      %p50 = scmp.eq.s32.totalorder %s30, 0
      %p51 = por %p49, %p50
      %p52 = scmp.ne.s32.totalorder %s38, %s39
      %p53 = scmp.eq.s32.totalorder %s31, 1
      %p54 = por %p52, %p53
      %p56 = scmp.ne.s32.totalorder %s39, %s55
      %p57 = scmp.eq.s32.totalorder %s31, 0
      %p58 = por %p56, %p57
      %s59 = ssub.s32 %s25, %s32
      %p60 = scmp.eq.s32.totalorder %s59, 0
      %s62 = sadd.s32 %s61, 1
      %s63 = scalar_select %p60, %s61, %s62
      %p66 = pneg %p60
      %p67 = scmp.eq.s32.totalorder %s25, 1
      %p68 = por %p66, %p67
      %p69 = scmp.ne.s32.totalorder %s61, %s64
      %p70 = scmp.eq.s32.totalorder %s25, 0
      %p71 = por %p69, %p70
      %p72 = scmp.ne.s32.totalorder %s61, %s64
      %p73 = scmp.eq.s32.totalorder %s30, 1
      %p74 = por %p72, %p73
      %p75 = scmp.ne.s32.totalorder %s64, %s65
      %p76 = scmp.eq.s32.totalorder %s30, 0
      %p77 = por %p75, %p76
      %p78 = scmp.ne.s32.totalorder %s64, %s65
      %p79 = scmp.eq.s32.totalorder %s31, 1
      %p80 = por %p78, %p79
      %p82 = scmp.ne.s32.totalorder %s65, %s81
      %p83 = scmp.eq.s32.totalorder %s31, 0
      %p84 = por %p82, %p83
      %s86 = sadd.s32 %s85, 1
      %p89 = scmp.eq.s32.totalorder %s25, 1
      %p90 = scmp.ne.s32.totalorder %s85, %s87
      %p91 = scmp.eq.s32.totalorder %s25, 0
      %p92 = por %p90, %p91
      %p93 = scmp.ne.s32.totalorder %s85, %s87
      %p94 = scmp.eq.s32.totalorder %s30, 1
      %p95 = por %p93, %p94
      %p96 = scmp.ne.s32.totalorder %s87, %s88
      %p97 = scmp.eq.s32.totalorder %s30, 0
      %p98 = por %p96, %p97
      %p99 = scmp.ne.s32.totalorder %s87, %s88
      %p100 = scmp.eq.s32.totalorder %s31, 1
      %p101 = por %p99, %p100
      %p103 = scmp.ne.s32.totalorder %s88, %s102
      %p104 = scmp.eq.s32.totalorder %s31, 0
      %p105 = por %p103, %p104
      %s107 = sadd.s32 %s106, 1
      %p110 = scmp.eq.s32.totalorder %s25, 1
      %p111 = scmp.ne.s32.totalorder %s106, %s108
      %p112 = scmp.eq.s32.totalorder %s25, 0
      %p113 = por %p111, %p112
      %p114 = scmp.ne.s32.totalorder %s106, %s108
      %p115 = scmp.eq.s32.totalorder %s30, 1
      %p116 = por %p114, %p115
      %p117 = scmp.ne.s32.totalorder %s108, %s109
      %p118 = scmp.eq.s32.totalorder %s30, 0
      %p119 = por %p117, %p118
      %p120 = scmp.ne.s32.totalorder %s108, %s109
      %p121 = scmp.eq.s32.totalorder %s31, 1
      %p122 = por %p120, %p121
      %p124 = scmp.ne.s32.totalorder %s109, %s123
      %p125 = scmp.eq.s32.totalorder %s31, 0
      %p126 = por %p124, %p125
      %s128 = sadd.s32 %s127, 1
      %p131 = scmp.eq.s32.totalorder %s25, 1
      %p132 = scmp.ne.s32.totalorder %s127, %s129
      %p133 = scmp.eq.s32.totalorder %s25, 0
      %p134 = por %p132, %p133
      %p135 = scmp.ne.s32.totalorder %s127, %s129
      %p136 = scmp.eq.s32.totalorder %s30, 1
      %p137 = por %p135, %p136
      %p138 = scmp.ne.s32.totalorder %s129, %s130
      %p139 = scmp.eq.s32.totalorder %s30, 0
      %p140 = por %p138, %p139
      %p141 = scmp.ne.s32.totalorder %s129, %s130
      %p142 = scmp.eq.s32.totalorder %s31, 1
      %p143 = por %p141, %p142
      %p145 = scmp.ne.s32.totalorder %s130, %s144
      %p146 = scmp.eq.s32.totalorder %s31, 0
      %p147 = por %p145, %p146
      %s149 = sadd.s32 %s148, 1
      %p152 = scmp.eq.s32.totalorder %s25, 1
      %p153 = scmp.ne.s32.totalorder %s148, %s150
      %p154 = scmp.eq.s32.totalorder %s25, 0
      %p155 = por %p153, %p154
      %p156 = scmp.ne.s32.totalorder %s148, %s150
      %p157 = scmp.eq.s32.totalorder %s30, 1
      %p158 = por %p156, %p157
      %p159 = scmp.ne.s32.totalorder %s150, %s151
      %p160 = scmp.eq.s32.totalorder %s30, 0
      %p161 = por %p159, %p160
      %p162 = scmp.ne.s32.totalorder %s150, %s151
      %p163 = scmp.eq.s32.totalorder %s31, 1
      %p164 = por %p162, %p163
      %p166 = scmp.ne.s32.totalorder %s151, %s165
      %p167 = scmp.eq.s32.totalorder %s31, 0
      %p168 = por %p166, %p167
      %s170 = sadd.s32 %s169, 1
      %p173 = scmp.eq.s32.totalorder %s25, 1
      %p174 = scmp.ne.s32.totalorder %s169, %s171
      %p175 = scmp.eq.s32.totalorder %s25, 0
      %p176 = por %p174, %p175
      %p177 = scmp.ne.s32.totalorder %s169, %s171
      %p178 = scmp.eq.s32.totalorder %s30, 1
      %p179 = por %p177, %p178
      %p180 = scmp.ne.s32.totalorder %s171, %s172
      %p181 = scmp.eq.s32.totalorder %s30, 0
      %p182 = por %p180, %p181
      %p183 = scmp.ne.s32.totalorder %s171, %s172
      %p184 = scmp.eq.s32.totalorder %s31, 1
      %p185 = por %p183, %p184
      %p187 = scmp.ne.s32.totalorder %s172, %s186
      %p188 = scmp.eq.s32.totalorder %s31, 0
      %p189 = por %p187, %p188
      %s191 = sadd.s32 %s190, 1
      %p194 = scmp.eq.s32.totalorder %s25, 1
      %p195 = scmp.ne.s32.totalorder %s190, %s192
      %p196 = scmp.eq.s32.totalorder %s25, 0
      %p197 = por %p195, %p196
      %p198 = scmp.ne.s32.totalorder %s190, %s192
      %p199 = scmp.eq.s32.totalorder %s30, 1
      %p200 = por %p198, %p199
      %p201 = scmp.ne.s32.totalorder %s192, %s193
      %p202 = scmp.eq.s32.totalorder %s30, 0
      %p203 = por %p201, %p202
      %p204 = scmp.ne.s32.totalorder %s192, %s193
      %p205 = scmp.eq.s32.totalorder %s31, 1
      %p206 = por %p204, %p205
      %p208 = scmp.ne.s32.totalorder %s193, %s207
      %p209 = scmp.eq.s32.totalorder %s31, 0
      %p210 = por %p208, %p209
      %s212 = sadd.s32 %s211, 1
      %p215 = scmp.eq.s32.totalorder %s25, 1
      %p216 = scmp.ne.s32.totalorder %s211, %s213
      %p217 = scmp.eq.s32.totalorder %s25, 0
      %p218 = por %p216, %p217
      %p219 = scmp.ne.s32.totalorder %s211, %s213
      %p220 = scmp.eq.s32.totalorder %s30, 1
      %p221 = por %p219, %p220
      %p222 = scmp.ne.s32.totalorder %s213, %s214
      %p223 = scmp.eq.s32.totalorder %s30, 0
      %p224 = por %p222, %p223
      %p225 = scmp.ne.s32.totalorder %s213, %s214
      %p226 = scmp.eq.s32.totalorder %s31, 1
      %p227 = por %p225, %p226
      %p229 = scmp.ne.s32.totalorder %s214, %s228
      %p230 = scmp.eq.s32.totalorder %s31, 0
      %p231 = por %p229, %p230
      %s233 = sadd.s32 %s232, 1
      %p236 = scmp.eq.s32.totalorder %s25, 1
      %p237 = scmp.ne.s32.totalorder %s232, %s234
      %p238 = scmp.eq.s32.totalorder %s25, 0
      %p239 = por %p237, %p238
      %p240 = scmp.ne.s32.totalorder %s232, %s234
      %p241 = scmp.eq.s32.totalorder %s30, 1
      %p242 = por %p240, %p241
      %p243 = scmp.ne.s32.totalorder %s234, %s235
      %p244 = scmp.eq.s32.totalorder %s30, 0
      %p245 = por %p243, %p244
      %p246 = scmp.ne.s32.totalorder %s234, %s235
      %p247 = scmp.eq.s32.totalorder %s31, 1
      %p248 = por %p246, %p247
      %p250 = scmp.ne.s32.totalorder %s235, %s249
      %p251 = scmp.eq.s32.totalorder %s31, 0
      %p252 = por %p250, %p251
      %s253 = ssub.s32 %s25, %s32
      %p254 = scmp.eq.s32.totalorder %s253, 0
      %s256 = sadd.s32 %s255, 1
      %s257 = scalar_select %p254, %s255, %s256
      %p260 = pneg %p254
      %p261 = scmp.eq.s32.totalorder %s25, 1
      %p262 = por %p260, %p261
      %p263 = scmp.ne.s32.totalorder %s255, %s258
      %p264 = scmp.eq.s32.totalorder %s25, 0
      %p265 = por %p263, %p264
      %p266 = scmp.ne.s32.totalorder %s255, %s258
      %p267 = scmp.eq.s32.totalorder %s30, 1
      %p268 = por %p266, %p267
      %p269 = scmp.ne.s32.totalorder %s258, %s259
      %p270 = scmp.eq.s32.totalorder %s30, 0
      %p271 = por %p269, %p270
      %p272 = scmp.ne.s32.totalorder %s258, %s259
      %p273 = scmp.eq.s32.totalorder %s31, 1
      %p274 = por %p272, %p273
      %p276 = scmp.ne.s32.totalorder %s259, %s275
      %p277 = scmp.eq.s32.totalorder %s31, 0
      %p278 = por %p276, %p277
      %p279 = scmp.le.s32.totalorder 1, %s25
      %p280 = scmp.lt.s32.totalorder %s25, 3
      %p281 = pnand %p279, %p280
      %p282 = pneg %p281
      // Predicated region
      $region9: #{tpu_custom_call.1} parent=5 // pred_check
        _
      $region10: #{tpu_custom_call.1} parent=5 // pred_check_branch
        %284 = sbr.rel (%p281) target = $region12
      $region11: #{tpu_custom_call.1} parent=5 // pred_region
        %s285 = ssub.s32 %s25, 1
        // Predicated region
        $region13: #{tpu_custom_call.1} parent=11 // pred_check
          %p286 = pneg %p98
        $region14: #{tpu_custom_call.1} parent=11 // pred_check_branch
          %288 = sbr.rel (%p286) target = $region16
        $region15: #{tpu_custom_call.1} parent=11 // pred_region
          _
        $region16: #{tpu_custom_call.1} parent=11 // pred_fallthru
          _
        // Predicated region
        $region17: #{tpu_custom_call.1} parent=11 // pred_check
          %p289 = pneg %p119
        $region18: #{tpu_custom_call.1} parent=11 // pred_check_branch
          %291 = sbr.rel (%p289) target = $region20
        $region19: #{tpu_custom_call.1} parent=11 // pred_region
          _
        $region20: #{tpu_custom_call.1} parent=11 // pred_fallthru
          _
        // Predicated region
        $region21: #{tpu_custom_call.1} parent=11 // pred_check
          %p292 = pneg %p140
        $region22: #{tpu_custom_call.1} parent=11 // pred_check_branch
          %294 = sbr.rel (%p292) target = $region24
        $region23: #{tpu_custom_call.1} parent=11 // pred_region
          _
        $region24: #{tpu_custom_call.1} parent=11 // pred_fallthru
          _
        // Predicated region
        $region25: #{tpu_custom_call.1} parent=11 // pred_check
          %p295 = pneg %p161
        $region26: #{tpu_custom_call.1} parent=11 // pred_check_branch
          %297 = sbr.rel (%p295) target = $region28
        $region27: #{tpu_custom_call.1} parent=11 // pred_region
          _
        $region28: #{tpu_custom_call.1} parent=11 // pred_fallthru
          _
        // Predicated region
        $region29: #{tpu_custom_call.1} parent=11 // pred_check
          %p298 = pneg %p182
        $region30: #{tpu_custom_call.1} parent=11 // pred_check_branch
          %300 = sbr.rel (%p298) target = $region32
        $region31: #{tpu_custom_call.1} parent=11 // pred_region
          _
        $region32: #{tpu_custom_call.1} parent=11 // pred_fallthru
          _
        // Predicated region
        $region33: #{tpu_custom_call.1} parent=11 // pred_check
          %p301 = pneg %p203
        $region34: #{tpu_custom_call.1} parent=11 // pred_check_branch
          %303 = sbr.rel (%p301) target = $region36
        $region35: #{tpu_custom_call.1} parent=11 // pred_region
          _
        $region36: #{tpu_custom_call.1} parent=11 // pred_fallthru
          _
        // Predicated region
        $region37: #{tpu_custom_call.1} parent=11 // pred_check
          %p304 = pneg %p224
        $region38: #{tpu_custom_call.1} parent=11 // pred_check_branch
          %306 = sbr.rel (%p304) target = $region40
        $region39: #{tpu_custom_call.1} parent=11 // pred_region
          _
        $region40: #{tpu_custom_call.1} parent=11 // pred_fallthru
          _
        // Predicated region
        $region41: #{tpu_custom_call.1} parent=11 // pred_check
          %p307 = pneg %p245
        $region42: #{tpu_custom_call.1} parent=11 // pred_check_branch
          %309 = sbr.rel (%p307) target = $region44
        $region43: #{tpu_custom_call.1} parent=11 // pred_region
          _
        $region44: #{tpu_custom_call.1} parent=11 // pred_fallthru
          _
      $region12: #{tpu_custom_call.1} parent=5 // pred_fallthru
        _
      %p310 = scmp.lt.s32.totalorder %s25, 2
      // Predicated region
      $region45: #{tpu_custom_call.1} parent=5 // pred_check
        %p311 = pneg %p310
      $region46: #{tpu_custom_call.1} parent=5 // pred_check_branch
        %313 = sbr.rel (%p311) target = $region48
      $region47: #{tpu_custom_call.1} parent=5 // pred_region
        // Predicated region
        $region49: #{tpu_custom_call.1} parent=47 // pred_check
          %p314 = pneg %p45
        $region50: #{tpu_custom_call.1} parent=47 // pred_check_branch
          %316 = sbr.rel (%p314) target = $region52
        $region51: #{tpu_custom_call.1} parent=47 // pred_region
          %s317 = sand.u32 %s35, 1
          %s318 = scalar_lea.sflag [#allocation3], %s317
          %s319 = sand.u32 %s35, 1
          %s320 = smul.addr %s319, 8
          %s321 = scalar_lea.vmem [#allocation2], %s320
          %323 = vsyncadd %s318, 0
          %s324 = smul.addr %s25, 8
          %s325 = scalar_lea.hbm %s0, %s324
          %s327 = sshll.u32 %s325, 4
          %s328 = int_to_ptr.hbm [resolvable:$true] %s327
          %s329 = sshll.u32 %s321, 4
          %s330 = int_to_ptr.vmem [resolvable:$true] %s329
          %332 = dma.hbm_to_vmem [thread:$0]  %s328, 128, %s330, %s318
        $region52: #{tpu_custom_call.1} parent=47 // pred_fallthru
          _
        // Predicated region
        $region53: #{tpu_custom_call.1} parent=47 // pred_check
          %p333 = pneg %p71
        $region54: #{tpu_custom_call.1} parent=47 // pred_check_branch
          %335 = sbr.rel (%p333) target = $region56
        $region55: #{tpu_custom_call.1} parent=47 // pred_region
          %s336 = sand.u32 %s61, 1
          %s337 = scalar_lea.sflag [#allocation6], %s336
          %s338 = sand.u32 %s61, 1
          %s339 = scalar_lea.vmem [#allocation5], %s338
          %341 = vsyncadd %s337, 0
          %s342 = scalar_lea.hbm %s1, %s25
          %s344 = sshll.u32 %s342, 4
          %s345 = int_to_ptr.hbm [resolvable:$true] %s344
          %s346 = sshll.u32 %s339, 4
          %s347 = int_to_ptr.vmem [resolvable:$true] %s346
          %349 = dma.hbm_to_vmem [thread:$0]  %s345, 16, %s347, %s337
        $region56: #{tpu_custom_call.1} parent=47 // pred_fallthru
          _
      $region48: #{tpu_custom_call.1} parent=5 // pred_fallthru
        _
      %p350 = scmp.le.s32.totalorder 1, %s25
      %p351 = scmp.lt.s32.totalorder %s25, 3
      %p352 = pnand %p350, %p351
      %p353 = pneg %p352
      // Predicated region
      $region57: #{tpu_custom_call.1} parent=5 // pred_check
        _
      $region58: #{tpu_custom_call.1} parent=5 // pred_check_branch
        %355 = sbr.rel (%p352) target = $region60
      $region59: #{tpu_custom_call.1} parent=5 // pred_region
        %s356 = ssub.s32 %s25, 1
        %s357 = sand.u32 %s38, 1
        %s358 = scalar_lea.sflag [#allocation3], %s357
        %s359 = sand.u32 %s38, 1
        %s360 = smul.addr %s359, 8
        %s361 = scalar_lea.vmem [#allocation2], %s360
        // Predicated region
        $region61: #{tpu_custom_call.1} parent=59 // pred_check
          %p362 = pneg %p51
        $region62: #{tpu_custom_call.1} parent=59 // pred_check_branch
          %364 = sbr.rel (%p362) target = $region64
        $region63: #{tpu_custom_call.1} parent=59 // pred_region
          %366 = dma.done %s358, 128
        $region64: #{tpu_custom_call.1} parent=59 // pred_fallthru
          _
        %s367 = sand.u32 %s64, 1
        %s368 = scalar_lea.sflag [#allocation6], %s367
        %s369 = sand.u32 %s64, 1
        %s370 = scalar_lea.vmem [#allocation5], %s369
        // Predicated region
        $region65: #{tpu_custom_call.1} parent=59 // pred_check
          %p371 = pneg %p77
        $region66: #{tpu_custom_call.1} parent=59 // pred_check_branch
          %373 = sbr.rel (%p371) target = $region68
        $region67: #{tpu_custom_call.1} parent=59 // pred_region
          %375 = dma.done %s368, 16
        $region68: #{tpu_custom_call.1} parent=59 // pred_fallthru
          _
        %s376 = sand.u32 %s38, 1
        %s377 = scalar_lea.sflag [#allocation3], %s376
        %s378 = sand.u32 %s38, 1
        %s379 = smul.addr %s378, 8
        %s380 = scalar_lea.vmem [#allocation2], %s379
        %p381 = pneg %p51
        %p382 = pneg %p48
        %s383 = sand.u32 %s64, 1
        %s384 = scalar_lea.sflag [#allocation6], %s383
        %s385 = sand.u32 %s64, 1
        %s386 = scalar_lea.vmem [#allocation5], %s385
        %p387 = pneg %p77
        %p388 = pneg %p74
        %p389 = pneg %p98
        %p390 = pneg %p95
        %p391 = pneg %p119
        %p392 = pneg %p116
        %p393 = pneg %p140
        %p394 = pneg %p137
        %p395 = pneg %p161
        %p396 = pneg %p158
        %p397 = pneg %p182
        %p398 = pneg %p179
        %p399 = pneg %p203
        %p400 = pneg %p200
        %p401 = pneg %p224
        %p402 = pneg %p221
        %p403 = pneg %p245
        %p404 = pneg %p242
        %p405 = pneg %p271
        %p406 = pneg %p268
        %s407 = sand.u32 %s258, 1
        %s408 = scalar_lea.sflag [#allocation4], %s407
        %s409 = sand.u32 %s258, 1
        %s410 = smul.addr %s409, 8
        %s411 = scalar_lea.vmem [#allocation7], %s410
        %v412 = vld [vmem:[%s361] sm:$0xff]
        %v413 = vld [vmem:[%s2] sm:$0xff]
        %v414 = vld [vmem:[%s2 + $0x8] sm:$0xff]
        %v415 = vld [vmem:[%s2 + $0x10] sm:$0xff]
        %v416 = vld [vmem:[%s2 + $0x18] sm:$0xff]
        %v417 = vld [vmem:[%s3] sm:$0x1]
        %v419 = vperm.slane %v417, 0
        %vm421 = vcmask 261120
        %v423 = vsel %vm421, %v412, 0
        %425 = vmatpush.msra.mxu0 0.0
        %426 = vmatpush.msra.mxu0 0.0
        %427 = vmatpush.msra.mxu0 0.0
        %428 = vmatpush.msra.mxu0 0.0
        %429 = vmatpush.msra.mxu0 0.0
        %430 = vmatpush.msra.mxu0 0.0
        %431 = vmatpush.msra.mxu0 0.0
        %432 = vmatpush.msra.mxu0 0.0
        %433 = vmatpush.msra.mxu0 0.0
        %434 = vmatpush.msra.mxu0 0.0
        %435 = vmatpush.msra.mxu0 0.0
        %436 = vmatpush.msra.mxu0 0.0
        %437 = vmatpush.msra.mxu0 %v416
        %438 = vmatpush.msra.mxu0 %v415
        %439 = vmatpush.msra.mxu0 %v414
        %440 = vmatpush.msra.mxu0 %v413
        %441 = vmatmul.f32.gmra.mxu0 %v423
        %v442 = vpop.f32.mrf.mxu0
        %v443 = vadd.f32 %v419, %v442
        %444 = vdwg.mxu0
        %v445 = vld [vmem:[%s370] sm:$0x1]
        %v447 = vperm.slane %v445, 0
        %450 = vrot.lane.b32.xlu0 %v443, 96
        %v451 = vpop.permute.xlu0 %450
        %vm452 = vcmask 64512
        %v453 = vsel %vm452, %v443, 0
        %v455 = vsel %vm452, %v451, 0
        %457 = vmatpush.xpose.msra.mxu0 0.0
        %458 = vmatpush.xpose.msra.mxu0 0.0
        %459 = vmatpush.xpose.msra.mxu0 0.0
        %460 = vmatpush.xpose.msra.mxu0 0.0
        %461 = vmatpush.xpose.msra.mxu0 0.0
        %462 = vmatpush.xpose.msra.mxu0 0.0
        %463 = vmatpush.xpose.msra.mxu0 0.0
        %464 = vmatpush.xpose.msra.mxu0 0.0
        %465 = vmatpush.xpose.msra.mxu0 0.0
        %466 = vmatpush.xpose.msra.mxu0 0.0
        %467 = vmatpush.xpose.msra.mxu0 0.0
        %468 = vmatpush.xpose.msra.mxu0 0.0
        %469 = vmatpush.xpose.msra.mxu0 0.0
        %470 = vmatpush.xpose.msra.mxu0 0.0
        %471 = vmatpush.xpose.msra.mxu0 0.0
        %472 = vmatpush.xpose.msra.mxu0 %v455
        %473 = vmatmul.f32.gmra.mxu0 %v453
        %v474 = vpop.f32.mrf.mxu0
        %v475 = vadd.f32 %v447, %v474
        %476 = vdwg.mxu0
        %v477 = vsel %vm452, %v475, -inf
        %478 = vmax.xlane.f32.xlu0 %v477
        %v479 = vpop.xlane.xlu0 %478
        %v480 = vsub.f32 %v475, %v479
        %v481 = vmul.f32 %v480, 1.442695
        %v482 = vpow.pop %v481
        %v483 = vsel %vm452, %v482, 0.0
        %484 = vadd.xlane.f32.xlu0 %v483
        %v485 = vpop.xlane.xlu0 %484
        %v486 = vrcp.pop %v485
        %v487 = vmul.f32 %v485, %v486
        %v488 = vsub.f32 1.0, %v487
        %v489 = vmul.f32 %v486, %v488
        %v490 = vadd.f32 %v486, %v489
        %vm491 = vweird.f32 %v485
        %vm492 = vweird.f32 %v486
        %vm493 = vmor %vm491, %vm492
        %v494 = vsel %vm493, %v486, %v490
        %v495 = vand.u32 2147483647, %v485
        %vm496 = vcmp.eq.f32.partialorder %v495, 8.507059e+37
        %v497 = vand.u32 %v485, 2147483648
        %v498 = vor.u32 1.1754944e-38, %v497
        %v499 = vsel %vm496, %v498, %v494
        %v500 = vmul.f32 %v482, %v499
        %501 = vrot.lane.b32.xlu0 %v443, 64
        %v502 = vpop.permute.xlu0 %501
        %v505 = vsel %vm452, %v500, 0
        %507 = vmatpush.msra.mxu0 0.0
        %508 = vmatpush.msra.mxu0 0.0
        %509 = vmatpush.msra.mxu0 0.0
        %510 = vmatpush.msra.mxu0 0.0
        %511 = vmatpush.msra.mxu0 0.0
        %512 = vmatpush.msra.mxu0 0.0
        %513 = vmatpush.msra.mxu0 0.0
        %514 = vmatpush.msra.mxu0 0.0
        %515 = vmatpush.msra.mxu0 0.0
        %516 = vmatpush.msra.mxu0 0.0
        %517 = vmatpush.msra.mxu0 0.0
        %518 = vmatpush.msra.mxu0 0.0
        %519 = vmatpush.msra.mxu0 0.0
        %520 = vmatpush.msra.mxu0 0.0
        %521 = vmatpush.msra.mxu0 0.0
        %522 = vmatpush.msra.mxu0 %v502
        %523 = vmatmul.f32.gmra.mxu0 %v505
        %v524 = vpop.f32.mrf.mxu0
        %v525 = vadd.f32 0.0, %v524
        %526 = vdwg.mxu0
        %527 = vrot.lane.b32.xlu0 %v443, 120
        %v528 = vpop.permute.xlu0 %527
        %529 = vrot.lane.b32.xlu0 %v443, 88
        %v530 = vpop.permute.xlu0 %529
        %v531 = vsel %vm452, %v528, 0
        %v533 = vsel %vm452, %v530, 0
        %535 = vmatpush.xpose.msra.mxu0 0.0
        %536 = vmatpush.xpose.msra.mxu0 0.0
        %537 = vmatpush.xpose.msra.mxu0 0.0
        %538 = vmatpush.xpose.msra.mxu0 0.0
        %539 = vmatpush.xpose.msra.mxu0 0.0
        %540 = vmatpush.xpose.msra.mxu0 0.0
        %541 = vmatpush.xpose.msra.mxu0 0.0
        %542 = vmatpush.xpose.msra.mxu0 0.0
        %543 = vmatpush.xpose.msra.mxu0 0.0
        %544 = vmatpush.xpose.msra.mxu0 0.0
        %545 = vmatpush.xpose.msra.mxu0 0.0
        %546 = vmatpush.xpose.msra.mxu0 0.0
        %547 = vmatpush.xpose.msra.mxu0 0.0
        %548 = vmatpush.xpose.msra.mxu0 0.0
        %549 = vmatpush.xpose.msra.mxu0 0.0
        %550 = vmatpush.xpose.msra.mxu0 %v533
        %551 = vmatmul.f32.gmra.mxu0 %v531
        %v552 = vpop.f32.mrf.mxu0
        %v553 = vadd.f32 %v447, %v552
        %554 = vdwg.mxu0
        %v555 = vsel %vm452, %v553, -inf
        %556 = vmax.xlane.f32.xlu0 %v555
        %v557 = vpop.xlane.xlu0 %556
        %v558 = vsub.f32 %v553, %v557
        %v559 = vmul.f32 %v558, 1.442695
        %v560 = vpow.pop %v559
        %v561 = vsel %vm452, %v560, 0.0
        %562 = vadd.xlane.f32.xlu0 %v561
        %v563 = vpop.xlane.xlu0 %562
        %v564 = vrcp.pop %v563
        %v565 = vmul.f32 %v563, %v564
        %v566 = vsub.f32 1.0, %v565
        %v567 = vmul.f32 %v564, %v566
        %v568 = vadd.f32 %v564, %v567
        %vm569 = vweird.f32 %v563
        %vm570 = vweird.f32 %v564
        %vm571 = vmor %vm569, %vm570
        %v572 = vsel %vm571, %v564, %v568
        %v573 = vand.u32 2147483647, %v563
        %vm574 = vcmp.eq.f32.partialorder %v573, 8.507059e+37
        %v575 = vand.u32 %v563, 2147483648
        %v576 = vor.u32 1.1754944e-38, %v575
        %v577 = vsel %vm574, %v576, %v572
        %v578 = vmul.f32 %v560, %v577
        %579 = vrot.lane.b32.xlu0 %v443, 56
        %v580 = vpop.permute.xlu0 %579
        %v583 = vsel %vm452, %v578, 0
        %585 = vmatpush.msra.mxu0 0.0
        %586 = vmatpush.msra.mxu0 0.0
        %587 = vmatpush.msra.mxu0 0.0
        %588 = vmatpush.msra.mxu0 0.0
        %589 = vmatpush.msra.mxu0 0.0
        %590 = vmatpush.msra.mxu0 0.0
        %591 = vmatpush.msra.mxu0 0.0
        %592 = vmatpush.msra.mxu0 0.0
        %593 = vmatpush.msra.mxu0 0.0
        %594 = vmatpush.msra.mxu0 0.0
        %595 = vmatpush.msra.mxu0 0.0
        %596 = vmatpush.msra.mxu0 0.0
        %597 = vmatpush.msra.mxu0 0.0
        %598 = vmatpush.msra.mxu0 0.0
        %599 = vmatpush.msra.mxu0 0.0
        %600 = vmatpush.msra.mxu0 %v580
        %601 = vmatmul.f32.gmra.mxu0 %v583
        %v602 = vpop.f32.mrf.mxu0
        %v603 = vadd.f32 0.0, %v602
        %604 = vdwg.mxu0
        %605 = vrot.lane.b32.xlu0 %v443, 112
        %v606 = vpop.permute.xlu0 %605
        %607 = vrot.lane.b32.xlu0 %v443, 80
        %v608 = vpop.permute.xlu0 %607
        %v609 = vsel %vm452, %v606, 0
        %v611 = vsel %vm452, %v608, 0
        %613 = vmatpush.xpose.msra.mxu0 0.0
        %614 = vmatpush.xpose.msra.mxu0 0.0
        %615 = vmatpush.xpose.msra.mxu0 0.0
        %616 = vmatpush.xpose.msra.mxu0 0.0
        %617 = vmatpush.xpose.msra.mxu0 0.0
        %618 = vmatpush.xpose.msra.mxu0 0.0
        %619 = vmatpush.xpose.msra.mxu0 0.0
        %620 = vmatpush.xpose.msra.mxu0 0.0
        %621 = vmatpush.xpose.msra.mxu0 0.0
        %622 = vmatpush.xpose.msra.mxu0 0.0
        %623 = vmatpush.xpose.msra.mxu0 0.0
        %624 = vmatpush.xpose.msra.mxu0 0.0
        %625 = vmatpush.xpose.msra.mxu0 0.0
        %626 = vmatpush.xpose.msra.mxu0 0.0
        %627 = vmatpush.xpose.msra.mxu0 0.0
        %628 = vmatpush.xpose.msra.mxu0 %v611
        %629 = vmatmul.f32.gmra.mxu0 %v609
        %v630 = vpop.f32.mrf.mxu0
        %v631 = vadd.f32 %v447, %v630
        %632 = vdwg.mxu0
        %v633 = vsel %vm452, %v631, -inf
        %634 = vmax.xlane.f32.xlu0 %v633
        %v635 = vpop.xlane.xlu0 %634
        %v636 = vsub.f32 %v631, %v635
        %v637 = vmul.f32 %v636, 1.442695
        %v638 = vpow.pop %v637
        %v639 = vsel %vm452, %v638, 0.0
        %640 = vadd.xlane.f32.xlu0 %v639
        %v641 = vpop.xlane.xlu0 %640
        %v642 = vrcp.pop %v641
        %v643 = vmul.f32 %v641, %v642
        %v644 = vsub.f32 1.0, %v643
        %v645 = vmul.f32 %v642, %v644
        %v646 = vadd.f32 %v642, %v645
        %vm647 = vweird.f32 %v641
        %vm648 = vweird.f32 %v642
        %vm649 = vmor %vm647, %vm648
        %v650 = vsel %vm649, %v642, %v646
        %v651 = vand.u32 2147483647, %v641
        %vm652 = vcmp.eq.f32.partialorder %v651, 8.507059e+37
        %v653 = vand.u32 %v641, 2147483648
        %v654 = vor.u32 1.1754944e-38, %v653
        %v655 = vsel %vm652, %v654, %v650
        %v656 = vmul.f32 %v638, %v655
        %657 = vrot.lane.b32.xlu0 %v443, 48
        %v658 = vpop.permute.xlu0 %657
        %v661 = vsel %vm452, %v656, 0
        %663 = vmatpush.msra.mxu0 0.0
        %664 = vmatpush.msra.mxu0 0.0
        %665 = vmatpush.msra.mxu0 0.0
        %666 = vmatpush.msra.mxu0 0.0
        %667 = vmatpush.msra.mxu0 0.0
        %668 = vmatpush.msra.mxu0 0.0
        %669 = vmatpush.msra.mxu0 0.0
        %670 = vmatpush.msra.mxu0 0.0
        %671 = vmatpush.msra.mxu0 0.0
        %672 = vmatpush.msra.mxu0 0.0
        %673 = vmatpush.msra.mxu0 0.0
        %674 = vmatpush.msra.mxu0 0.0
        %675 = vmatpush.msra.mxu0 0.0
        %676 = vmatpush.msra.mxu0 0.0
        %677 = vmatpush.msra.mxu0 0.0
        %678 = vmatpush.msra.mxu0 %v658
        %679 = vmatmul.f32.gmra.mxu0 %v661
        %v680 = vpop.f32.mrf.mxu0
        %v681 = vadd.f32 0.0, %v680
        %682 = vdwg.mxu0
        %683 = vrot.lane.b32.xlu0 %v443, 104
        %v684 = vpop.permute.xlu0 %683
        %685 = vrot.lane.b32.xlu0 %v443, 72
        %v686 = vpop.permute.xlu0 %685
        %v687 = vsel %vm452, %v684, 0
        %v689 = vsel %vm452, %v686, 0
        %691 = vmatpush.xpose.msra.mxu0 0.0
        %692 = vmatpush.xpose.msra.mxu0 0.0
        %693 = vmatpush.xpose.msra.mxu0 0.0
        %694 = vmatpush.xpose.msra.mxu0 0.0
        %695 = vmatpush.xpose.msra.mxu0 0.0
        %696 = vmatpush.xpose.msra.mxu0 0.0
        %697 = vmatpush.xpose.msra.mxu0 0.0
        %698 = vmatpush.xpose.msra.mxu0 0.0
        %699 = vmatpush.xpose.msra.mxu0 0.0
        %700 = vmatpush.xpose.msra.mxu0 0.0
        %701 = vmatpush.xpose.msra.mxu0 0.0
        %702 = vmatpush.xpose.msra.mxu0 0.0
        %703 = vmatpush.xpose.msra.mxu0 0.0
        %704 = vmatpush.xpose.msra.mxu0 0.0
        %705 = vmatpush.xpose.msra.mxu0 0.0
        %706 = vmatpush.xpose.msra.mxu0 %v689
        %707 = vmatmul.f32.gmra.mxu0 %v687
        %v708 = vpop.f32.mrf.mxu0
        %v709 = vadd.f32 %v447, %v708
        %710 = vdwg.mxu0
        %v711 = vsel %vm452, %v709, -inf
        %712 = vmax.xlane.f32.xlu0 %v711
        %v713 = vpop.xlane.xlu0 %712
        %v714 = vsub.f32 %v709, %v713
        %v715 = vmul.f32 %v714, 1.442695
        %v716 = vpow.pop %v715
        %v717 = vsel %vm452, %v716, 0.0
        %718 = vadd.xlane.f32.xlu0 %v717
        %v719 = vpop.xlane.xlu0 %718
        %v720 = vrcp.pop %v719
        %v721 = vmul.f32 %v719, %v720
        %v722 = vsub.f32 1.0, %v721
        %v723 = vmul.f32 %v720, %v722
        %v724 = vadd.f32 %v720, %v723
        %vm725 = vweird.f32 %v719
        %vm726 = vweird.f32 %v720
        %vm727 = vmor %vm725, %vm726
        %v728 = vsel %vm727, %v720, %v724
        %v729 = vand.u32 2147483647, %v719
        %vm730 = vcmp.eq.f32.partialorder %v729, 8.507059e+37
        %v731 = vand.u32 %v719, 2147483648
        %v732 = vor.u32 1.1754944e-38, %v731
        %v733 = vsel %vm730, %v732, %v728
        %v734 = vmul.f32 %v716, %v733
        %735 = vrot.lane.b32.xlu0 %v443, 40
        %v736 = vpop.permute.xlu0 %735
        %v739 = vsel %vm452, %v734, 0
        %741 = vmatpush.msra.mxu0 0.0
        %742 = vmatpush.msra.mxu0 0.0
        %743 = vmatpush.msra.mxu0 0.0
        %744 = vmatpush.msra.mxu0 0.0
        %745 = vmatpush.msra.mxu0 0.0
        %746 = vmatpush.msra.mxu0 0.0
        %747 = vmatpush.msra.mxu0 0.0
        %748 = vmatpush.msra.mxu0 0.0
        %749 = vmatpush.msra.mxu0 0.0
        %750 = vmatpush.msra.mxu0 0.0
        %751 = vmatpush.msra.mxu0 0.0
        %752 = vmatpush.msra.mxu0 0.0
        %753 = vmatpush.msra.mxu0 0.0
        %754 = vmatpush.msra.mxu0 0.0
        %755 = vmatpush.msra.mxu0 0.0
        %756 = vmatpush.msra.mxu0 %v736
        %757 = vmatmul.f32.gmra.mxu0 %v739
        %v758 = vpop.f32.mrf.mxu0
        %v759 = vadd.f32 0.0, %v758
        %760 = vdwg.mxu0
        %762 = vrot.lane.b32.xlu0 %v603, 8
        %v763 = vpop.permute.xlu0 %762
        %766 = vrot.lane.b32.xlu0 %v681, 16
        %v767 = vpop.permute.xlu0 %766
        %770 = vrot.lane.b32.xlu0 %v759, 24
        %v771 = vpop.permute.xlu0 %770
        %v773 = vsel %vm452, %v525, %v763
        %vm774 = vcmask 130048
        %v775 = vsel %vm774, %v773, %v767
        %vm776 = vcmask 195584
        %v777 = vsel %vm776, %v775, %v771
        %v778 = vld [vmem:[%s4] sm:$0xff]
        %v779 = vld [vmem:[%s4 + $0x8] sm:$0xff]
        %v780 = vld [vmem:[%s4 + $0x10] sm:$0xff]
        %v781 = vld [vmem:[%s4 + $0x18] sm:$0xff]
        %v782 = vld [vmem:[%s5] sm:$0x1]
        %v784 = vperm.slane %v782, 0
        %v787 = vsel %vm421, %v777, 0
        %789 = vmatpush.msra.mxu0 0.0
        %790 = vmatpush.msra.mxu0 0.0
        %791 = vmatpush.msra.mxu0 0.0
        %792 = vmatpush.msra.mxu0 0.0
        %793 = vmatpush.msra.mxu0 0.0
        %794 = vmatpush.msra.mxu0 0.0
        %795 = vmatpush.msra.mxu0 0.0
        %796 = vmatpush.msra.mxu0 0.0
        %797 = vmatpush.msra.mxu0 0.0
        %798 = vmatpush.msra.mxu0 0.0
        %799 = vmatpush.msra.mxu0 0.0
        %800 = vmatpush.msra.mxu0 0.0
        %801 = vmatpush.msra.mxu0 %v781
        %802 = vmatpush.msra.mxu0 %v780
        %803 = vmatpush.msra.mxu0 %v779
        %804 = vmatpush.msra.mxu0 %v778
        %805 = vmatmul.f32.gmra.mxu0 %v787
        %v806 = vpop.f32.mrf.mxu0
        %v807 = vadd.f32 %v784, %v806
        %808 = vdwg.mxu0
        %v809 = vadd.f32 %v412, %v807
        %v810 = vld [vmem:[%s6] sm:$0xff]
        %v811 = vld [vmem:[%s6 + $0x8] sm:$0xff]
        %v812 = vld [vmem:[%s6 + $0x10] sm:$0xff]
        %v813 = vld [vmem:[%s6 + $0x18] sm:$0xff]
        %v814 = vld [vmem:[%s7] sm:$0x1]
        %v816 = vperm.slane %v814, 0
        %v819 = vsel %vm421, %v809, 0
        %821 = vmatpush.msra.mxu0 0.0
        %822 = vmatpush.msra.mxu0 0.0
        %823 = vmatpush.msra.mxu0 0.0
        %824 = vmatpush.msra.mxu0 0.0
        %825 = vmatpush.msra.mxu0 0.0
        %826 = vmatpush.msra.mxu0 0.0
        %827 = vmatpush.msra.mxu0 0.0
        %828 = vmatpush.msra.mxu0 0.0
        %829 = vmatpush.msra.mxu0 0.0
        %830 = vmatpush.msra.mxu0 0.0
        %831 = vmatpush.msra.mxu0 0.0
        %832 = vmatpush.msra.mxu0 0.0
        %833 = vmatpush.msra.mxu0 %v813
        %834 = vmatpush.msra.mxu0 %v812
        %835 = vmatpush.msra.mxu0 %v811
        %836 = vmatpush.msra.mxu0 %v810
        %837 = vmatmul.f32.gmra.mxu0 %v819
        %v838 = vpop.f32.mrf.mxu0
        %v839 = vadd.f32 %v816, %v838
        %840 = vdwg.mxu0
        %v841 = vmax.f32 %v839, 0.0
        %v842 = vld [vmem:[%s8] sm:$0xff]
        %v843 = vld [vmem:[%s8 + $0x8] sm:$0xff]
        %v844 = vld [vmem:[%s8 + $0x10] sm:$0xff]
        %v845 = vld [vmem:[%s8 + $0x18] sm:$0xff]
        %v846 = vld [vmem:[%s8 + $0x20] sm:$0xff]
        %v847 = vld [vmem:[%s8 + $0x28] sm:$0xff]
        %v848 = vld [vmem:[%s8 + $0x30] sm:$0xff]
        %v849 = vld [vmem:[%s8 + $0x38] sm:$0xff]
        %v850 = vld [vmem:[%s9] sm:$0x1]
        %v852 = vperm.slane %v850, 0
        %vm854 = vcmask 523264
        %v856 = vsel %vm854, %v841, 0
        %858 = vmatpush.msra.mxu0 0.0
        %859 = vmatpush.msra.mxu0 0.0
        %860 = vmatpush.msra.mxu0 0.0
        %861 = vmatpush.msra.mxu0 0.0
        %862 = vmatpush.msra.mxu0 0.0
        %863 = vmatpush.msra.mxu0 0.0
        %864 = vmatpush.msra.mxu0 0.0
        %865 = vmatpush.msra.mxu0 0.0
        %866 = vmatpush.msra.mxu0 %v849
        %867 = vmatpush.msra.mxu0 %v848
        %868 = vmatpush.msra.mxu0 %v847
        %869 = vmatpush.msra.mxu0 %v846
        %870 = vmatpush.msra.mxu0 %v845
        %871 = vmatpush.msra.mxu0 %v844
        %872 = vmatpush.msra.mxu0 %v843
        %873 = vmatpush.msra.mxu0 %v842
        %874 = vmatmul.f32.gmra.mxu0 %v856
        %v875 = vpop.f32.mrf.mxu0
        %v876 = vadd.f32 %v852, %v875
        %877 = vdwg.mxu0
        %v878 = vadd.f32 %v809, %v876
        %879 = vst.msk [vmem:[%s411] sm:$0xff] %vm421, %v878
        %s880 = sand.u32 %s258, 1
        %s881 = scalar_lea.sflag [#allocation4], %s880
        %s882 = sand.u32 %s258, 1
        %s883 = smul.addr %s882, 8
        %s884 = scalar_lea.vmem [#allocation7], %s883
        // Predicated region
        $region69: #{tpu_custom_call.1} parent=59 // pred_check
          %p885 = pneg %p268
        $region70: #{tpu_custom_call.1} parent=59 // pred_check_branch
          %887 = sbr.rel (%p885) target = $region72
        $region71: #{tpu_custom_call.1} parent=59 // pred_region
          %889 = vsyncadd %s881, 0
          %s890 = smul.addr %s30, 8
          %s891 = scalar_lea.hbm %s10, %s890
          %s893 = sshll.u32 %s884, 4
          %s894 = int_to_ptr.vmem [resolvable:$true] %s893
          %s895 = sshll.u32 %s891, 4
          %s896 = int_to_ptr.hbm [resolvable:$true] %s895
          %898 = dma.vmem_to_hbm [thread:$0]  %s894, 128, %s896, %s881
        $region72: #{tpu_custom_call.1} parent=59 // pred_fallthru
          _
      $region60: #{tpu_custom_call.1} parent=5 // pred_fallthru
        _
      %p899 = scmp.le.s32.totalorder 2, %s25
      // Predicated region
      $region73: #{tpu_custom_call.1} parent=5 // pred_check
        %p900 = pneg %p899
      $region74: #{tpu_custom_call.1} parent=5 // pred_check_branch
        %902 = sbr.rel (%p900) target = $region76
      $region75: #{tpu_custom_call.1} parent=5 // pred_region
        %s903 = ssub.s32 %s25, 2
        // Predicated region
        $region77: #{tpu_custom_call.1} parent=75 // pred_check
          %p904 = pneg %p274
        $region78: #{tpu_custom_call.1} parent=75 // pred_check_branch
          %906 = sbr.rel (%p904) target = $region80
        $region79: #{tpu_custom_call.1} parent=75 // pred_region
          %s907 = sand.u32 %s259, 1
          %s908 = scalar_lea.sflag [#allocation4], %s907
          %s909 = sand.u32 %s259, 1
          %s910 = smul.addr %s909, 8
          %s911 = scalar_lea.vmem [#allocation7], %s910
          %913 = dma.done %s908, 128
        $region80: #{tpu_custom_call.1} parent=75 // pred_fallthru
          _
      $region76: #{tpu_custom_call.1} parent=5 // pred_fallthru
        _
    $region6: #{tpu_custom_call.1} parent=1 // loop_footer
      %s29 = sadd.s32 1, %s25
    $region7: #{tpu_custom_call.1} parent=1 // loop_footer_branch
      %24 = sbr.rel target = $region3
    $region8: #{tpu_custom_call.1} parent=1 // loop_exit
      _
    %914 = vsyncpa [#allocation3], 1
    %s915 = scalar_lea.sflag [#allocation3], 1
    %916 = vsyncpa %s915, 1
    %917 = vsyncpa [#allocation6], 1
    %s918 = scalar_lea.sflag [#allocation6], 1
    %919 = vsyncpa %s918, 1
    %920 = vsyncpa [#allocation4], 1
    %s921 = scalar_lea.sflag [#allocation4], 1
    %922 = vsyncpa %s921, 1

</llo_original>
